<compile_context>
chip_gen: v5e
topology: v5e:2x2
jax: 0.10.0
libtpu: 0.0.40
codegen_flags: <defaults>
</compile_context>

<pallas_src>
import functools
import math

import jax
import jax.numpy as jnp
from jax.experimental import pallas as pl
from jax.experimental.pallas import tpu as pltpu


# ------------------------------------------------------------------ kernel ---
def _block_kernel(x_ref, c1_ref, c2_ref, anw_ref, fnw_ref,
                  wq_ref, wk_ref, wv_ref, wo_ref, w1_ref, w3_ref, w2_ref,
                  o_ref, ctx_ref, *, n_heads, n_kv_heads, head_dim, eps):
    S = x_ref.shape[1]
    hd = head_dim
    hd2 = head_dim // 2
    rep = n_heads // n_kv_heads
    bf16 = jnp.bfloat16

    x = x_ref[0].astype(jnp.float32)                      # (S, D)

    def rmsnorm(v, w):                                    # f32 elementwise (v5e-safe)
        return v * jax.lax.rsqrt(jnp.mean(v * v, axis=-1, keepdims=True) + eps) * w

    # ---- attention RMSNorm ----
    h_b = rmsnorm(x, anw_ref[...]).astype(bf16)

    # ---- QKV projections (bf16 MXU, f32 accumulate); 1/sqrt(hd) already folded in wq ----
    q = jnp.dot(h_b, wq_ref[...], preferred_element_type=jnp.float32)   # (S, Fq) de-interleaved
    k = jnp.dot(h_b, wk_ref[...], preferred_element_type=jnp.float32)   # (S, Fk) de-interleaved
    v = jnp.dot(h_b, wv_ref[...], preferred_element_type=jnp.float32)   # (S, Fk) original order

    # ---- RoPE in rotate-half form on the de-interleaved [evens | odds] per-head layout:
    #      out = t * c1 + swap_halves(t) * c2   (no permutation matmuls, no half-width FMAs)
    c1 = c1_ref[...]                                      # (S, hd) = [f00 | f11]
    c2 = c2_ref[...]                                      # (S, hd) = [f01 | f10]

    def rope(t):                                          # t: (S, hd) = [evens | odds]
        if hd % 128 == 0:
            t_sw = pltpu.roll(t, shift=hd2, axis=-1)      # XLU lane rotate (production path)
        else:                                             # toy / non-lane-aligned head_dim
            t_sw = jnp.concatenate([t[:, hd2:], t[:, :hd2]], axis=-1)
        return t * c1 + t_sw * c2

    # ---- GQA attention: one batched dot per KV group (rep query heads stacked on rows);
    #      per-head contexts land in a bf16 VMEM scratch for a single wo matmul.
    # TODO(synk): switch to lax.fori_loop(..., unroll=2) with pl.ds slices for large
    #             n_kv_heads to bound live ranges of the (rep*S, S) score temporaries.
    for g in range(n_kv_heads):
        k_g = rope(k[:, g * hd:(g + 1) * hd]).astype(bf16)               # (S, hd)
        v_g = v[:, g * hd:(g + 1) * hd].astype(bf16)                     # (S, hd)
        q_g = jnp.concatenate(
            [rope(q[:, (g * rep + r) * hd:(g * rep + r + 1) * hd])
             for r in range(rep)], axis=0).astype(bf16)                  # (rep*S, hd)

        s = jax.lax.dot_general(q_g, k_g, (((1,), (1,)), ((), ())),
                                preferred_element_type=jnp.float32)      # (rep*S, S)
        e = jnp.exp(s - jnp.max(s, axis=-1, keepdims=True))              # <= 1, bf16-safe
        l = jnp.sum(e, axis=-1, keepdims=True)                           # (rep*S, 1)
        ctx_g = jnp.dot(e.astype(bf16), v_g,
                        preferred_element_type=jnp.float32)              # (rep*S, hd)
        # deferred normalization: O(rep*S*hd) multiply instead of O(rep*S*S)
        ctx_g = ctx_g * pl.reciprocal(l, approx=True)

        for r in range(rep):
            hq = g * rep + r
            ctx_ref[:, hq * hd:(hq + 1) * hd] = (
                ctx_g[r * S:(r + 1) * S, :].astype(ctx_ref.dtype))

    # ---- single output projection over all heads + residual ----
    attn = jnp.dot(ctx_ref[...], wo_ref[...], preferred_element_type=jnp.float32)  # (S, D)
    x1 = x + attn

    # ---- FFN RMSNorm + SwiGLU + residual ----
    hn = rmsnorm(x1, fnw_ref[...]).astype(bf16)
    h1 = jnp.dot(hn, w1_ref[...], preferred_element_type=jnp.float32)
    h3 = jnp.dot(hn, w3_ref[...], preferred_element_type=jnp.float32)
    g_act = (h1 * jax.nn.sigmoid(h1)) * h3                                # silu(h1) * h3, f32
    o_ref[0] = (x1 + jnp.dot(g_act.astype(bf16), w2_ref[...],
                             preferred_element_type=jnp.float32)).astype(o_ref.dtype)


# ----------------------------------------------------------------- wrapper ---
def transformer_block_pallas(x, freq_cis, params, *, n_heads, n_kv_heads,
                             head_dim, eps):
    B, S, D = x.shape
    assert head_dim % 2 == 0
    Fq = n_heads * head_dim
    Fk = n_kv_heads * head_dim
    hidden = params["w1"].shape[1]
    bf16 = jnp.bfloat16
    scale = 1.0 / math.sqrt(head_dim)

    # RoPE coefficients in the de-interleaved rotate-half layout, (S, head_dim) each:
    #   c1 = [f00 | f11],  c2 = [f01 | f10]
    Fc = freq_cis[:S].astype(jnp.float32)                 # (S, hd//2, 2, 2)
    c1 = jnp.concatenate([Fc[:, :, 0, 0], Fc[:, :, 1, 1]], axis=-1)
    c2 = jnp.concatenate([Fc[:, :, 0, 1], Fc[:, :, 1, 0]], axis=-1)

    # De-interleave wq/wk columns per head: [even features | odd features].  Applying the
    # same permutation to q and k leaves per-head dot products unchanged (v / wo stay in
    # original order).  Fold the softmax 1/sqrt(head_dim) into wq — RoPE is linear, so
    # scores are unchanged and the per-score multiply in the kernel is eliminated.
    perm_head = jnp.concatenate([jnp.arange(0, head_dim, 2), jnp.arange(1, head_dim, 2)])
    perm_q = (jnp.arange(n_heads)[:, None] * head_dim + perm_head[None, :]).reshape(-1)
    perm_k = (jnp.arange(n_kv_heads)[:, None] * head_dim + perm_head[None, :]).reshape(-1)

    wq = (params["wq"] * scale)[:, perm_q].astype(bf16)
    wk = params["wk"][:, perm_k].astype(bf16)
    wv = params["wv"].astype(bf16)
    wo = params["wo"].astype(bf16)
    w1 = params["w1"].astype(bf16)
    w3 = params["w3"].astype(bf16)
    w2 = params["w2"].astype(bf16)
    anw = params["attn_norm_w"].reshape(1, D).astype(jnp.float32)
    fnw = params["ffn_norm_w"].reshape(1, D).astype(jnp.float32)

    kernel = functools.partial(_block_kernel, n_heads=n_heads,
                               n_kv_heads=n_kv_heads, head_dim=head_dim, eps=eps)

    # Grid-invariant inputs: single-buffered (no pointless double-buffer VMEM).
    inv = lambda shape: pl.BlockSpec(shape, lambda b: (0, 0),
                                     pipeline_mode=pl.Buffered(1))

    grid_spec = pltpu.PrefetchScalarGridSpec(
        num_scalar_prefetch=0,
        grid=(B,),
        in_specs=[
            pl.BlockSpec((1, S, D), lambda b: (b, 0, 0)),       # x (per-step block)
            inv((S, head_dim)), inv((S, head_dim)),             # c1, c2 (RoPE coeffs)
            inv((1, D)), inv((1, D)),                           # attn_norm_w, ffn_norm_w
            inv((D, Fq)), inv((D, Fk)), inv((D, Fk)),           # wq, wk, wv (bf16)
            inv((Fq, D)),                                       # wo
            inv((D, hidden)), inv((D, hidden)),                 # w1, w3
            inv((hidden, D)),                                   # w2
        ],
        out_specs=pl.BlockSpec((1, S, D), lambda b: (b, 0, 0)),
        scratch_shapes=[pltpu.VMEM((S, Fq), jnp.bfloat16)],     # per-head context slab
    )

    # TODO(synk): activation I/O kept f32 for parity with the f32 torch reference at toy
    #             shapes; at production dims make x / out bf16 to halve per-step DMA.
    return pl.pallas_call(
        kernel,
        out_shape=jax.ShapeDtypeStruct((B, S, D), jnp.float32),
        grid_spec=grid_spec,
        compiler_params=pltpu.CompilerParams(
            dimension_semantics=("parallel",),
            vmem_limit_bytes=32 * 1024 * 1024),
    )(x, c1, c2, anw, fnw, wq, wk, wv, wo, w1, w3, w2)


# --------------------------------------------------------- pure-JAX reference
def transformer_block_ref(x, freq_cis, p, *, n_heads, n_kv_heads, head_dim, eps):
    B, S, D = x.shape

    def rmsnorm(v, w):
        return v * jax.lax.rsqrt(jnp.mean(v * v, axis=-1, keepdims=True) + eps) * w

    h = rmsnorm(x, p["attn_norm_w"])
    xq = (h @ p["wq"]).reshape(B, S, n_heads, head_dim)
    xk = (h @ p["wk"]).reshape(B, S, n_kv_heads, head_dim)
    xv = (h @ p["wv"]).reshape(B, S, n_kv_heads, head_dim)

    F = freq_cis[:S].astype(jnp.float32)             # (S, hd//2, 2, 2)

    def rope(t):
        H = t.shape[2]
        t_ = t.reshape(B, S, H, head_dim // 2, 1, 2)
        Fb = F.reshape(1, S, 1, head_dim // 2, 2, 2)
        return (t_ * Fb).sum(-1).reshape(B, S, H, head_dim)

    xq, xk = rope(xq), rope(xk)
    rep = n_heads // n_kv_heads
    xk = jnp.repeat(xk, rep, axis=2)
    xv = jnp.repeat(xv, rep, axis=2)

    scale = 1.0 / math.sqrt(head_dim)
    scores = jnp.einsum("bqhd,bkhd->bhqk", xq, xk) * scale
    p_attn = jax.nn.softmax(scores, axis=-1)
    out = jnp.einsum("bhqk,bkhd->bqhd", p_attn, xv).reshape(B, S, n_heads * head_dim)
    x1 = x + out @ p["wo"]

    hn = rmsnorm(x1, p["ffn_norm_w"])
    g = jax.nn.silu(hn @ p["w1"]) * (hn @ p["w3"])
    return x1 + g @ p["w2"]


# -------------------------------------------------------------------- main ---
if __name__ == "__main__":
    # small config consistent with the module
    B, S, D = 2, 8, 32
    n_heads, n_kv_heads, head_dim = 4, 2, 8
    rope_theta = 10000.0
    multiple_of = 32
    norm_eps = 1e-5

    # FeedForward hidden dim exactly as in the module __init__
    hidden = int(2 * (4 * D) / 3)
    hidden = multiple_of * ((hidden + multiple_of - 1) // multiple_of)   # -> 96

    key = jax.random.PRNGKey(0)
    ks = jax.random.split(key, 9)
    init_std = D ** -0.5
    out_std = hidden ** -0.5
    params = {
        "wq": jax.random.normal(ks[0], (D, n_heads * head_dim), jnp.float32) * init_std,
        "wk": jax.random.normal(ks[1], (D, n_kv_heads * head_dim), jnp.float32) * init_std,
        "wv": jax.random.normal(ks[2], (D, n_kv_heads * head_dim), jnp.float32) * init_std,
        "wo": jax.random.normal(ks[3], (n_heads * head_dim, D), jnp.float32) * init_std,
        "w1": jax.random.normal(ks[4], (D, hidden), jnp.float32) * init_std,
        "w3": jax.random.normal(ks[5], (D, hidden), jnp.float32) * init_std,
        "w2": jax.random.normal(ks[6], (hidden, D), jnp.float32) * out_std,
        "attn_norm_w": jnp.ones((D,), jnp.float32),
        "ffn_norm_w": jnp.ones((D,), jnp.float32),
    }

    # rotary freq_cis in (seq, hd//2, 2, 2) rotation-matrix form
    inv_freq = 1.0 / (rope_theta ** (jnp.arange(0, head_dim, 2, dtype=jnp.float32) / head_dim))
    t = jnp.arange(S, dtype=jnp.float32)
    ang = jnp.einsum("s,f->sf", t, inv_freq)                     # (S, hd//2)
    cos, sin = jnp.cos(ang), jnp.sin(ang)
    freq_cis = jnp.stack(
        [jnp.stack([cos, -sin], axis=-1), jnp.stack([sin, cos], axis=-1)], axis=-2
    )                                                            # (S, hd//2, 2, 2)

    x = jax.random.normal(ks[7], (B, S, D), jnp.float32)

    out = transformer_block_pallas(
        x, freq_cis, params, n_heads=n_heads, n_kv_heads=n_kv_heads,
        head_dim=head_dim, eps=norm_eps)
    out = jax.block_until_ready(out)

    with jax.default_matmul_precision("highest"):
        ref = transformer_block_ref(
            x, freq_cis, params, n_heads=n_heads, n_kv_heads=n_kv_heads,
            head_dim=head_dim, eps=norm_eps)
    ref = jax.block_until_ready(ref)

    err = float(jnp.max(jnp.abs(out - ref)))
    assert out.shape == (B, S, D)
    # bf16 matmul operands (f32 accumulation) + approx reciprocal -> relaxed abs tolerance
    assert err < 5e-2, f"max abs err too large: {err}"
    print("KERNEL_OK")
</pallas_src>

<mosaic_0001>
module attributes {stable_mosaic.version = 11 : i64} {
  func.func @_block_kernel(%arg0: i32, %arg1: memref<1x8x32xf32, #tpu.memory_space<vmem>>, %arg2: memref<8x8xf32, #tpu.memory_space<vmem>>, %arg3: memref<8x8xf32, #tpu.memory_space<vmem>>, %arg4: memref<1x32xf32, #tpu.memory_space<vmem>>, %arg5: memref<1x32xf32, #tpu.memory_space<vmem>>, %arg6: memref<32x32xbf16, #tpu.memory_space<vmem>>, %arg7: memref<32x16xbf16, #tpu.memory_space<vmem>>, %arg8: memref<32x16xbf16, #tpu.memory_space<vmem>>, %arg9: memref<32x32xbf16, #tpu.memory_space<vmem>>, %arg10: memref<32x96xbf16, #tpu.memory_space<vmem>>, %arg11: memref<32x96xbf16, #tpu.memory_space<vmem>>, %arg12: memref<96x32xbf16, #tpu.memory_space<vmem>>, %arg13: memref<1x8x32xf32, #tpu.memory_space<vmem>>, %arg14: memref<8x32xbf16, #tpu.memory_space<vmem>>) attributes {dimension_semantics = [#tpu.dimension_semantics<parallel>], iteration_bounds = array<i64: 2>, scalar_prefetch = 0 : i64, scratch_operands = 1 : i64, tpu.core_type = #tpu.core_type<tc>, window_params = [{transform_indices = @transform_0, window_bounds = array<i64: 1, 8, 32>}, {pipeline_mode = #tpu.pipeline_mode<synchronous>, transform_indices = @transform_1, window_bounds = array<i64: 8, 8>}, {pipeline_mode = #tpu.pipeline_mode<synchronous>, transform_indices = @transform_2, window_bounds = array<i64: 8, 8>}, {pipeline_mode = #tpu.pipeline_mode<synchronous>, transform_indices = @transform_3, window_bounds = array<i64: 1, 32>}, {pipeline_mode = #tpu.pipeline_mode<synchronous>, transform_indices = @transform_4, window_bounds = array<i64: 1, 32>}, {pipeline_mode = #tpu.pipeline_mode<synchronous>, transform_indices = @transform_5, window_bounds = array<i64: 32, 32>}, {pipeline_mode = #tpu.pipeline_mode<synchronous>, transform_indices = @transform_6, window_bounds = array<i64: 32, 16>}, {pipeline_mode = #tpu.pipeline_mode<synchronous>, transform_indices = @transform_7, window_bounds = array<i64: 32, 16>}, {pipeline_mode = #tpu.pipeline_mode<synchronous>, transform_indices = @transform_8, window_bounds = array<i64: 32, 32>}, {pipeline_mode = #tpu.pipeline_mode<synchronous>, transform_indices = @transform_9, window_bounds = array<i64: 32, 96>}, {pipeline_mode = #tpu.pipeline_mode<synchronous>, transform_indices = @transform_10, window_bounds = array<i64: 32, 96>}, {pipeline_mode = #tpu.pipeline_mode<synchronous>, transform_indices = @transform_11, window_bounds = array<i64: 96, 32>}, {transform_indices = @transform_12, window_bounds = array<i64: 1, 8, 32>}]} {
    %c0 = arith.constant 0 : index
    %c0_0 = arith.constant 0 : index
    %c0_1 = arith.constant 0 : index
    %0 = vector.load %arg1[%c0, %c0_0, %c0_1] : memref<1x8x32xf32, #tpu.memory_space<vmem>>, vector<1x8x32xf32>
    %1 = vector.shape_cast %0 : vector<1x8x32xf32> to vector<8x32xf32>
    %c0_2 = arith.constant 0 : index
    %c0_3 = arith.constant 0 : index
    %2 = vector.load %arg4[%c0_2, %c0_3] : memref<1x32xf32, #tpu.memory_space<vmem>>, vector<1x32xf32>
    %3 = arith.mulf %1, %1 : vector<8x32xf32>
    %cst = arith.constant dense<0.000000e+00> : vector<8xf32>
    %4 = vector.multi_reduction <add>, %3, %cst [1] : vector<8x32xf32> to vector<8xf32>
    %5 = vector.shape_cast %4 : vector<8xf32> to vector<8x1xf32>
    %cst_4 = arith.constant 3.200000e+01 : f32
    %6 = vector.broadcast %cst_4 : f32 to vector<8x1xf32>
    %7 = arith.divf %5, %6 : vector<8x1xf32>
    %cst_5 = arith.constant 9.99999974E-6 : f32
    %8 = vector.broadcast %cst_5 : f32 to vector<8x1xf32>
    %9 = arith.addf %7, %8 : vector<8x1xf32>
    %10 = math.rsqrt %9 : vector<8x1xf32>
    %11 = vector.broadcast %10 : vector<8x1xf32> to vector<8x32xf32>
    %12 = arith.mulf %1, %11 : vector<8x32xf32>
    %13 = vector.broadcast %2 : vector<1x32xf32> to vector<8x32xf32>
    %14 = arith.mulf %12, %13 : vector<8x32xf32>
    %15 = arith.truncf %14 : vector<8x32xf32> to vector<8x32xbf16>
    %c0_6 = arith.constant 0 : index
    %c0_7 = arith.constant 0 : index
    %16 = vector.load %arg6[%c0_6, %c0_7] : memref<32x32xbf16, #tpu.memory_space<vmem>>, vector<32x32xbf16>
    %cst_8 = arith.constant dense<0.000000e+00> : vector<8x32xf32>
    %17 = tpu.matmul %15, %16, %cst_8 {dimension_numbers = #tpu.dot_dimension_numbers<[1], [0], [0], [1], [0, 0, 1, 1], [], []>} : vector<8x32xbf16>, vector<32x32xbf16>, vector<8x32xf32> -> vector<8x32xf32>
    %c0_9 = arith.constant 0 : index
    %c0_10 = arith.constant 0 : index
    %18 = vector.load %arg7[%c0_9, %c0_10] : memref<32x16xbf16, #tpu.memory_space<vmem>>, vector<32x16xbf16>
    %cst_11 = arith.constant dense<0.000000e+00> : vector<8x16xf32>
    %19 = tpu.matmul %15, %18, %cst_11 {dimension_numbers = #tpu.dot_dimension_numbers<[1], [0], [0], [1], [0, 0, 1, 1], [], []>} : vector<8x32xbf16>, vector<32x16xbf16>, vector<8x16xf32> -> vector<8x16xf32>
    %c0_12 = arith.constant 0 : index
    %c0_13 = arith.constant 0 : index
    %20 = vector.load %arg8[%c0_12, %c0_13] : memref<32x16xbf16, #tpu.memory_space<vmem>>, vector<32x16xbf16>
    %cst_14 = arith.constant dense<0.000000e+00> : vector<8x16xf32>
    %21 = tpu.matmul %15, %20, %cst_14 {dimension_numbers = #tpu.dot_dimension_numbers<[1], [0], [0], [1], [0, 0, 1, 1], [], []>} : vector<8x32xbf16>, vector<32x16xbf16>, vector<8x16xf32> -> vector<8x16xf32>
    %c0_15 = arith.constant 0 : index
    %c0_16 = arith.constant 0 : index
    %22 = vector.load %arg2[%c0_15, %c0_16] : memref<8x8xf32, #tpu.memory_space<vmem>>, vector<8x8xf32>
    %c0_17 = arith.constant 0 : index
    %c0_18 = arith.constant 0 : index
    %23 = vector.load %arg3[%c0_17, %c0_18] : memref<8x8xf32, #tpu.memory_space<vmem>>, vector<8x8xf32>
    %24 = vector.extract_strided_slice %19 {offsets = [0, 0], sizes = [8, 8], strides = [1, 1]} : vector<8x16xf32> to vector<8x8xf32>
    %25 = vector.extract_strided_slice %24 {offsets = [0, 4], sizes = [8, 4], strides = [1, 1]} : vector<8x8xf32> to vector<8x4xf32>
    %26 = vector.extract_strided_slice %24 {offsets = [0, 0], sizes = [8, 4], strides = [1, 1]} : vector<8x8xf32> to vector<8x4xf32>
    %27 = tpu.concatenate %25, %26 in 1 : vector<8x4xf32>, vector<8x4xf32> -> vector<8x8xf32>
    %28 = arith.mulf %24, %22 : vector<8x8xf32>
    %29 = arith.mulf %27, %23 : vector<8x8xf32>
    %30 = arith.addf %28, %29 : vector<8x8xf32>
    %31 = arith.truncf %30 : vector<8x8xf32> to vector<8x8xbf16>
    %32 = vector.extract_strided_slice %21 {offsets = [0, 0], sizes = [8, 8], strides = [1, 1]} : vector<8x16xf32> to vector<8x8xf32>
    %33 = arith.truncf %32 : vector<8x8xf32> to vector<8x8xbf16>
    %34 = vector.extract_strided_slice %17 {offsets = [0, 0], sizes = [8, 8], strides = [1, 1]} : vector<8x32xf32> to vector<8x8xf32>
    %35 = vector.extract_strided_slice %34 {offsets = [0, 4], sizes = [8, 4], strides = [1, 1]} : vector<8x8xf32> to vector<8x4xf32>
    %36 = vector.extract_strided_slice %34 {offsets = [0, 0], sizes = [8, 4], strides = [1, 1]} : vector<8x8xf32> to vector<8x4xf32>
    %37 = tpu.concatenate %35, %36 in 1 : vector<8x4xf32>, vector<8x4xf32> -> vector<8x8xf32>
    %38 = arith.mulf %34, %22 : vector<8x8xf32>
    %39 = arith.mulf %37, %23 : vector<8x8xf32>
    %40 = arith.addf %38, %39 : vector<8x8xf32>
    %41 = vector.extract_strided_slice %17 {offsets = [0, 8], sizes = [8, 8], strides = [1, 1]} : vector<8x32xf32> to vector<8x8xf32>
    %42 = vector.extract_strided_slice %41 {offsets = [0, 4], sizes = [8, 4], strides = [1, 1]} : vector<8x8xf32> to vector<8x4xf32>
    %43 = vector.extract_strided_slice %41 {offsets = [0, 0], sizes = [8, 4], strides = [1, 1]} : vector<8x8xf32> to vector<8x4xf32>
    %44 = tpu.concatenate %42, %43 in 1 : vector<8x4xf32>, vector<8x4xf32> -> vector<8x8xf32>
    %45 = arith.mulf %41, %22 : vector<8x8xf32>
    %46 = arith.mulf %44, %23 : vector<8x8xf32>
    %47 = arith.addf %45, %46 : vector<8x8xf32>
    %48 = tpu.concatenate %40, %47 in 0 : vector<8x8xf32>, vector<8x8xf32> -> vector<16x8xf32>
    %49 = arith.truncf %48 : vector<16x8xf32> to vector<16x8xbf16>
    %cst_19 = arith.constant dense<0.000000e+00> : vector<16x8xf32>
    %50 = tpu.matmul %49, %31, %cst_19 {dimension_numbers = #tpu.dot_dimension_numbers<[1], [1], [0], [0], [0, 0, 1, 0], [], []>} : vector<16x8xbf16>, vector<8x8xbf16>, vector<16x8xf32> -> vector<16x8xf32>
    %cst_20 = arith.constant dense<0xFF800000> : vector<16xf32>
    %51 = vector.multi_reduction <maximumf>, %50, %cst_20 [1] : vector<16x8xf32> to vector<16xf32>
    %52 = vector.shape_cast %51 : vector<16xf32> to vector<16x1xf32>
    %53 = vector.broadcast %52 : vector<16x1xf32> to vector<16x8xf32>
    %54 = arith.subf %50, %53 : vector<16x8xf32>
    %55 = math.exp %54 : vector<16x8xf32>
    %cst_21 = arith.constant dense<0.000000e+00> : vector<16xf32>
    %56 = vector.multi_reduction <add>, %55, %cst_21 [1] : vector<16x8xf32> to vector<16xf32>
    %57 = vector.shape_cast %56 : vector<16xf32> to vector<16x1xf32>
    %58 = arith.truncf %55 : vector<16x8xf32> to vector<16x8xbf16>
    %cst_22 = arith.constant dense<0.000000e+00> : vector<16x8xf32>
    %59 = tpu.matmul %58, %33, %cst_22 {dimension_numbers = #tpu.dot_dimension_numbers<[1], [0], [0], [1], [0, 0, 1, 1], [], []>} : vector<16x8xbf16>, vector<8x8xbf16>, vector<16x8xf32> -> vector<16x8xf32>
    %60 = tpu.reciprocal %57 {approx = true} : vector<16x1xf32> -> vector<16x1xf32>
    %61 = vector.broadcast %60 : vector<16x1xf32> to vector<16x8xf32>
    %62 = arith.mulf %59, %61 : vector<16x8xf32>
    %63 = vector.extract_strided_slice %62 {offsets = [0, 0], sizes = [8, 8], strides = [1, 1]} : vector<16x8xf32> to vector<8x8xf32>
    %64 = arith.truncf %63 : vector<8x8xf32> to vector<8x8xbf16>
    %c0_23 = arith.constant 0 : index
    %c0_24 = arith.constant 0 : index
    %65 = vector.load %arg14[%c0_23, %c0_24] : memref<8x32xbf16, #tpu.memory_space<vmem>>, vector<8x8xbf16>
    tpu.vector_store %arg14[%c0_23, %c0_24], %64 {strides = array<i32>} : memref<8x32xbf16, #tpu.memory_space<vmem>>, vector<8x8xbf16>,
    %66 = vector.extract_strided_slice %62 {offsets = [8, 0], sizes = [8, 8], strides = [1, 1]} : vector<16x8xf32> to vector<8x8xf32>
    %67 = arith.truncf %66 : vector<8x8xf32> to vector<8x8xbf16>
    %c0_25 = arith.constant 0 : index
    %c8 = arith.constant 8 : index
    %68 = vector.load %arg14[%c0_25, %c8] : memref<8x32xbf16, #tpu.memory_space<vmem>>, vector<8x8xbf16>
    tpu.vector_store %arg14[%c0_25, %c8], %67 {strides = array<i32>} : memref<8x32xbf16, #tpu.memory_space<vmem>>, vector<8x8xbf16>,
    %69 = vector.extract_strided_slice %19 {offsets = [0, 8], sizes = [8, 8], strides = [1, 1]} : vector<8x16xf32> to vector<8x8xf32>
    %70 = vector.extract_strided_slice %69 {offsets = [0, 4], sizes = [8, 4], strides = [1, 1]} : vector<8x8xf32> to vector<8x4xf32>
    %71 = vector.extract_strided_slice %69 {offsets = [0, 0], sizes = [8, 4], strides = [1, 1]} : vector<8x8xf32> to vector<8x4xf32>
    %72 = tpu.concatenate %70, %71 in 1 : vector<8x4xf32>, vector<8x4xf32> -> vector<8x8xf32>
    %73 = arith.mulf %69, %22 : vector<8x8xf32>
    %74 = arith.mulf %72, %23 : vector<8x8xf32>
    %75 = arith.addf %73, %74 : vector<8x8xf32>
    %76 = arith.truncf %75 : vector<8x8xf32> to vector<8x8xbf16>
    %77 = vector.extract_strided_slice %21 {offsets = [0, 8], sizes = [8, 8], strides = [1, 1]} : vector<8x16xf32> to vector<8x8xf32>
    %78 = arith.truncf %77 : vector<8x8xf32> to vector<8x8xbf16>
    %79 = vector.extract_strided_slice %17 {offsets = [0, 16], sizes = [8, 8], strides = [1, 1]} : vector<8x32xf32> to vector<8x8xf32>
    %80 = vector.extract_strided_slice %79 {offsets = [0, 4], sizes = [8, 4], strides = [1, 1]} : vector<8x8xf32> to vector<8x4xf32>
    %81 = vector.extract_strided_slice %79 {offsets = [0, 0], sizes = [8, 4], strides = [1, 1]} : vector<8x8xf32> to vector<8x4xf32>
    %82 = tpu.concatenate %80, %81 in 1 : vector<8x4xf32>, vector<8x4xf32> -> vector<8x8xf32>
    %83 = arith.mulf %79, %22 : vector<8x8xf32>
    %84 = arith.mulf %82, %23 : vector<8x8xf32>
    %85 = arith.addf %83, %84 : vector<8x8xf32>
    %86 = vector.extract_strided_slice %17 {offsets = [0, 24], sizes = [8, 8], strides = [1, 1]} : vector<8x32xf32> to vector<8x8xf32>
    %87 = vector.extract_strided_slice %86 {offsets = [0, 4], sizes = [8, 4], strides = [1, 1]} : vector<8x8xf32> to vector<8x4xf32>
    %88 = vector.extract_strided_slice %86 {offsets = [0, 0], sizes = [8, 4], strides = [1, 1]} : vector<8x8xf32> to vector<8x4xf32>
    %89 = tpu.concatenate %87, %88 in 1 : vector<8x4xf32>, vector<8x4xf32> -> vector<8x8xf32>
    %90 = arith.mulf %86, %22 : vector<8x8xf32>
    %91 = arith.mulf %89, %23 : vector<8x8xf32>
    %92 = arith.addf %90, %91 : vector<8x8xf32>
    %93 = tpu.concatenate %85, %92 in 0 : vector<8x8xf32>, vector<8x8xf32> -> vector<16x8xf32>
    %94 = arith.truncf %93 : vector<16x8xf32> to vector<16x8xbf16>
    %cst_26 = arith.constant dense<0.000000e+00> : vector<16x8xf32>
    %95 = tpu.matmul %94, %76, %cst_26 {dimension_numbers = #tpu.dot_dimension_numbers<[1], [1], [0], [0], [0, 0, 1, 0], [], []>} : vector<16x8xbf16>, vector<8x8xbf16>, vector<16x8xf32> -> vector<16x8xf32>
    %cst_27 = arith.constant dense<0xFF800000> : vector<16xf32>
    %96 = vector.multi_reduction <maximumf>, %95, %cst_27 [1] : vector<16x8xf32> to vector<16xf32>
    %97 = vector.shape_cast %96 : vector<16xf32> to vector<16x1xf32>
    %98 = vector.broadcast %97 : vector<16x1xf32> to vector<16x8xf32>
    %99 = arith.subf %95, %98 : vector<16x8xf32>
    %100 = math.exp %99 : vector<16x8xf32>
    %cst_28 = arith.constant dense<0.000000e+00> : vector<16xf32>
    %101 = vector.multi_reduction <add>, %100, %cst_28 [1] : vector<16x8xf32> to vector<16xf32>
    %102 = vector.shape_cast %101 : vector<16xf32> to vector<16x1xf32>
    %103 = arith.truncf %100 : vector<16x8xf32> to vector<16x8xbf16>
    %cst_29 = arith.constant dense<0.000000e+00> : vector<16x8xf32>
    %104 = tpu.matmul %103, %78, %cst_29 {dimension_numbers = #tpu.dot_dimension_numbers<[1], [0], [0], [1], [0, 0, 1, 1], [], []>} : vector<16x8xbf16>, vector<8x8xbf16>, vector<16x8xf32> -> vector<16x8xf32>
    %105 = tpu.reciprocal %102 {approx = true} : vector<16x1xf32> -> vector<16x1xf32>
    %106 = vector.broadcast %105 : vector<16x1xf32> to vector<16x8xf32>
    %107 = arith.mulf %104, %106 : vector<16x8xf32>
    %108 = vector.extract_strided_slice %107 {offsets = [0, 0], sizes = [8, 8], strides = [1, 1]} : vector<16x8xf32> to vector<8x8xf32>
    %109 = arith.truncf %108 : vector<8x8xf32> to vector<8x8xbf16>
    %c0_30 = arith.constant 0 : index
    %c16 = arith.constant 16 : index
    %110 = vector.load %arg14[%c0_30, %c16] : memref<8x32xbf16, #tpu.memory_space<vmem>>, vector<8x8xbf16>
    tpu.vector_store %arg14[%c0_30, %c16], %109 {strides = array<i32>} : memref<8x32xbf16, #tpu.memory_space<vmem>>, vector<8x8xbf16>,
    %111 = vector.extract_strided_slice %107 {offsets = [8, 0], sizes = [8, 8], strides = [1, 1]} : vector<16x8xf32> to vector<8x8xf32>
    %112 = arith.truncf %111 : vector<8x8xf32> to vector<8x8xbf16>
    %c0_31 = arith.constant 0 : index
    %c24 = arith.constant 24 : index
    %113 = vector.load %arg14[%c0_31, %c24] : memref<8x32xbf16, #tpu.memory_space<vmem>>, vector<8x8xbf16>
    tpu.vector_store %arg14[%c0_31, %c24], %112 {strides = array<i32>} : memref<8x32xbf16, #tpu.memory_space<vmem>>, vector<8x8xbf16>,
    %c0_32 = arith.constant 0 : index
    %c0_33 = arith.constant 0 : index
    %114 = vector.load %arg14[%c0_32, %c0_33] : memref<8x32xbf16, #tpu.memory_space<vmem>>, vector<8x32xbf16>
    %c0_34 = arith.constant 0 : index
    %c0_35 = arith.constant 0 : index
    %115 = vector.load %arg9[%c0_34, %c0_35] : memref<32x32xbf16, #tpu.memory_space<vmem>>, vector<32x32xbf16>
    %cst_36 = arith.constant dense<0.000000e+00> : vector<8x32xf32>
    %116 = tpu.matmul %114, %115, %cst_36 {dimension_numbers = #tpu.dot_dimension_numbers<[1], [0], [0], [1], [0, 0, 1, 1], [], []>} : vector<8x32xbf16>, vector<32x32xbf16>, vector<8x32xf32> -> vector<8x32xf32>
    %117 = arith.addf %1, %116 : vector<8x32xf32>
    %c0_37 = arith.constant 0 : index
    %c0_38 = arith.constant 0 : index
    %118 = vector.load %arg5[%c0_37, %c0_38] : memref<1x32xf32, #tpu.memory_space<vmem>>, vector<1x32xf32>
    %119 = arith.mulf %117, %117 : vector<8x32xf32>
    %cst_39 = arith.constant dense<0.000000e+00> : vector<8xf32>
    %120 = vector.multi_reduction <add>, %119, %cst_39 [1] : vector<8x32xf32> to vector<8xf32>
    %121 = vector.shape_cast %120 : vector<8xf32> to vector<8x1xf32>
    %cst_40 = arith.constant 3.200000e+01 : f32
    %122 = vector.broadcast %cst_40 : f32 to vector<8x1xf32>
    %123 = arith.divf %121, %122 : vector<8x1xf32>
    %cst_41 = arith.constant 9.99999974E-6 : f32
    %124 = vector.broadcast %cst_41 : f32 to vector<8x1xf32>
    %125 = arith.addf %123, %124 : vector<8x1xf32>
    %126 = math.rsqrt %125 : vector<8x1xf32>
    %127 = vector.broadcast %126 : vector<8x1xf32> to vector<8x32xf32>
    %128 = arith.mulf %117, %127 : vector<8x32xf32>
    %129 = vector.broadcast %118 : vector<1x32xf32> to vector<8x32xf32>
    %130 = arith.mulf %128, %129 : vector<8x32xf32>
    %131 = arith.truncf %130 : vector<8x32xf32> to vector<8x32xbf16>
    %c0_42 = arith.constant 0 : index
    %c0_43 = arith.constant 0 : index
    %132 = vector.load %arg10[%c0_42, %c0_43] : memref<32x96xbf16, #tpu.memory_space<vmem>>, vector<32x96xbf16>
    %cst_44 = arith.constant dense<0.000000e+00> : vector<8x96xf32>
    %133 = tpu.matmul %131, %132, %cst_44 {dimension_numbers = #tpu.dot_dimension_numbers<[1], [0], [0], [1], [0, 0, 1, 1], [], []>} : vector<8x32xbf16>, vector<32x96xbf16>, vector<8x96xf32> -> vector<8x96xf32>
    %c0_45 = arith.constant 0 : index
    %c0_46 = arith.constant 0 : index
    %134 = vector.load %arg11[%c0_45, %c0_46] : memref<32x96xbf16, #tpu.memory_space<vmem>>, vector<32x96xbf16>
    %cst_47 = arith.constant dense<0.000000e+00> : vector<8x96xf32>
    %135 = tpu.matmul %131, %134, %cst_47 {dimension_numbers = #tpu.dot_dimension_numbers<[1], [0], [0], [1], [0, 0, 1, 1], [], []>} : vector<8x32xbf16>, vector<32x96xbf16>, vector<8x96xf32> -> vector<8x96xf32>
    %136 = arith.negf %133 : vector<8x96xf32>
    %137 = math.exp %136 : vector<8x96xf32>
    %cst_48 = arith.constant 1.000000e+00 : f32
    %138 = vector.broadcast %cst_48 : f32 to vector<8x96xf32>
    %139 = arith.addf %138, %137 : vector<8x96xf32>
    %140 = arith.divf %138, %139 : vector<8x96xf32>
    %141 = arith.mulf %133, %140 : vector<8x96xf32>
    %142 = arith.mulf %141, %135 : vector<8x96xf32>
    %143 = arith.truncf %142 : vector<8x96xf32> to vector<8x96xbf16>
    %c0_49 = arith.constant 0 : index
    %c0_50 = arith.constant 0 : index
    %144 = vector.load %arg12[%c0_49, %c0_50] : memref<96x32xbf16, #tpu.memory_space<vmem>>, vector<96x32xbf16>
    %cst_51 = arith.constant dense<0.000000e+00> : vector<8x32xf32>
    %145 = tpu.matmul %143, %144, %cst_51 {dimension_numbers = #tpu.dot_dimension_numbers<[1], [0], [0], [1], [0, 0, 1, 1], [], []>} : vector<8x96xbf16>, vector<96x32xbf16>, vector<8x32xf32> -> vector<8x32xf32>
    %146 = arith.addf %117, %145 : vector<8x32xf32>
    %c0_52 = arith.constant 0 : index
    %c0_53 = arith.constant 0 : index
    %c0_54 = arith.constant 0 : index
    %147 = vector.load %arg13[%c0_52, %c0_53, %c0_54] : memref<1x8x32xf32, #tpu.memory_space<vmem>>, vector<1x8x32xf32>
    %148 = vector.shape_cast %147 : vector<1x8x32xf32> to vector<8x32xf32>
    %149 = vector.shape_cast %146 : vector<8x32xf32> to vector<1x8x32xf32>
    tpu.vector_store %arg13[%c0_52, %c0_53, %c0_54], %149 {strides = array<i32>} : memref<1x8x32xf32, #tpu.memory_space<vmem>>, vector<1x8x32xf32>,
    return
  }
  func.func @transform_0(%arg0: i32) -> (i32, i32, i32) {
    %c0_i32 = arith.constant 0 : i32
    %c0_i32_0 = arith.constant 0 : i32
    %c0_i32_1 = arith.constant 0 : i32
    return %arg0, %c0_i32, %c0_i32_0 : i32, i32, i32
  }
  func.func @transform_1(%arg0: i32) -> (i32, i32) {
    %c0_i32 = arith.constant 0 : i32
    %c0_i32_0 = arith.constant 0 : i32
    %c0_i32_1 = arith.constant 0 : i32
    return %c0_i32, %c0_i32_0 : i32, i32
  }
  func.func @transform_2(%arg0: i32) -> (i32, i32) {
    %c0_i32 = arith.constant 0 : i32
    %c0_i32_0 = arith.constant 0 : i32
    %c0_i32_1 = arith.constant 0 : i32
    return %c0_i32, %c0_i32_0 : i32, i32
  }
  func.func @transform_3(%arg0: i32) -> (i32, i32) {
    %c0_i32 = arith.constant 0 : i32
    %c0_i32_0 = arith.constant 0 : i32
    %c0_i32_1 = arith.constant 0 : i32
    return %c0_i32, %c0_i32_0 : i32, i32
  }
  func.func @transform_4(%arg0: i32) -> (i32, i32) {
    %c0_i32 = arith.constant 0 : i32
    %c0_i32_0 = arith.constant 0 : i32
    %c0_i32_1 = arith.constant 0 : i32
    return %c0_i32, %c0_i32_0 : i32, i32
  }
  func.func @transform_5(%arg0: i32) -> (i32, i32) {
    %c0_i32 = arith.constant 0 : i32
    %c0_i32_0 = arith.constant 0 : i32
    %c0_i32_1 = arith.constant 0 : i32
    return %c0_i32, %c0_i32_0 : i32, i32
  }
  func.func @transform_6(%arg0: i32) -> (i32, i32) {
    %c0_i32 = arith.constant 0 : i32
    %c0_i32_0 = arith.constant 0 : i32
    %c0_i32_1 = arith.constant 0 : i32
    return %c0_i32, %c0_i32_0 : i32, i32
  }
  func.func @transform_7(%arg0: i32) -> (i32, i32) {
    %c0_i32 = arith.constant 0 : i32
    %c0_i32_0 = arith.constant 0 : i32
    %c0_i32_1 = arith.constant 0 : i32
    return %c0_i32, %c0_i32_0 : i32, i32
  }
  func.func @transform_8(%arg0: i32) -> (i32, i32) {
    %c0_i32 = arith.constant 0 : i32
    %c0_i32_0 = arith.constant 0 : i32
    %c0_i32_1 = arith.constant 0 : i32
    return %c0_i32, %c0_i32_0 : i32, i32
  }
  func.func @transform_9(%arg0: i32) -> (i32, i32) {
    %c0_i32 = arith.constant 0 : i32
    %c0_i32_0 = arith.constant 0 : i32
    %c0_i32_1 = arith.constant 0 : i32
    return %c0_i32, %c0_i32_0 : i32, i32
  }
  func.func @transform_10(%arg0: i32) -> (i32, i32) {
    %c0_i32 = arith.constant 0 : i32
    %c0_i32_0 = arith.constant 0 : i32
    %c0_i32_1 = arith.constant 0 : i32
    return %c0_i32, %c0_i32_0 : i32, i32
  }
  func.func @transform_11(%arg0: i32) -> (i32, i32) {
    %c0_i32 = arith.constant 0 : i32
    %c0_i32_0 = arith.constant 0 : i32
    %c0_i32_1 = arith.constant 0 : i32
    return %c0_i32, %c0_i32_0 : i32, i32
  }
  func.func @transform_12(%arg0: i32) -> (i32, i32, i32) {
    %c0_i32 = arith.constant 0 : i32
    %c0_i32_0 = arith.constant 0 : i32
    %c0_i32_1 = arith.constant 0 : i32
    return %arg0, %c0_i32, %c0_i32_0 : i32, i32, i32
  }
}

</mosaic_0001>

<llo_original>
// kernel: tpu_custom_call.1
$region0: #{tpu_custom_call.1}
  #allocation0 [shape = 'u32[]', space=smem, size = 0x4, offset = 0x4, fixed_abs, tag = 'smem constant byte address 0x4 - core index']
  #allocation1 [shape = 'u32[72,128]{1,0:T(1,128)}', space=vmem, size = 0x9000, scoped, tag = 'internal scratch']
  #allocation2 [shape = 'bf16[8,32]{1,0:T(8,128)(2,1)}', space=vmem, size = 0x800, scoped, tag = 'scratch operand']
  %s0 = inlined_call_operand.vmem [shape: f32[2,8,32], index: 0, kind: input, shape index: {}]
  %s1 = inlined_call_operand.vmem [shape: f32[8,8], index: 1, kind: input, shape index: {}]
  %s2 = inlined_call_operand.hbm [shape: f32[8,8], index: 2, kind: input, shape index: {}]
  %s3 = inlined_call_operand.vmem [shape: f32[1,32], index: 3, kind: input, shape index: {}]
  %s4 = inlined_call_operand.vmem [shape: f32[1,32], index: 4, kind: input, shape index: {}]
  %s5 = inlined_call_operand.vmem [shape: bf16[32,32], index: 5, kind: input, shape index: {}]
  %s6 = inlined_call_operand.vmem [shape: bf16[32,16], index: 6, kind: input, shape index: {}]
  %s7 = inlined_call_operand.vmem [shape: bf16[32,16], index: 7, kind: input, shape index: {}]
  %s8 = inlined_call_operand.vmem [shape: bf16[32,32], index: 8, kind: input, shape index: {}]
  %s9 = inlined_call_operand.vmem [shape: bf16[32,96], index: 9, kind: input, shape index: {}]
  %s10 = inlined_call_operand.vmem [shape: bf16[32,96], index: 10, kind: input, shape index: {}]
  %s11 = inlined_call_operand.vmem [shape: bf16[96,32], index: 11, kind: input, shape index: {}]
  %s12 = inlined_call_operand.hbm [shape: f32[2,8,32], index: 12, kind: output, shape index: {}]
  %s13 = sld [smem:[#allocation0]]
  $region85: #{tpu_custom_call.1} parent=0
    _
  %s15 = ssub.s32 1, %s13
  %s16 = scalar_select 0, %s15, %s13
  $region1: #{tpu_custom_call.1} parent=0
    #allocation3 [shape = 'u8[4096]{0}', space=vmem, size = 0x1000, scoped, tag = 'input window, operand 2, single buffered']
    #allocation4 [shape = 's32[2]{0}', space=sflag, size = 0x8, scoped, tag = 'scoped memory for tpu_custom_call.1']
    #allocation5 [shape = 's32[2]{0}', space=sflag, size = 0x8, scoped, tag = 'scoped memory for tpu_custom_call.1']
    #allocation6 [shape = 'u8[8192]{0}', space=vmem, size = 0x2000, scoped, tag = 'output window, operand 0']
    %17 = vsyncpa [#allocation4], 0
    %18 = vsyncpa [#allocation5], 0
    %s19 = scalar_lea.sflag [#allocation5], 1
    %20 = vsyncpa %s19, 0
    loop: start=0, step=1, limit=4
    $region2: #{tpu_custom_call.1} parent=1 // loop_pre_header
      _
    $region3: #{tpu_custom_call.1} parent=1 // loop_header
      %s22 = sphi 0, %s26
      %p23 = scmp.ge.s32.totalorder %s22, 4
      %s32 = sphi 0, %s34
      %s35 = sphi 0, %s32
      %s36 = sphi 0, %s35
      %s52 = sphi 0, %s36
      %s56 = sphi 0, %s56
      %s58 = sphi 0, %s56
      %s59 = sphi 0, %s58
      %s73 = sphi 0, %s59
      %s77 = sphi 0, %s77
      %s79 = sphi 0, %s77
      %s80 = sphi 0, %s79
      %s94 = sphi 0, %s80
      %s98 = sphi 0, %s98
      %s100 = sphi 0, %s98
      %s101 = sphi 0, %s100
      %s115 = sphi 0, %s101
      %s119 = sphi 0, %s119
      %s121 = sphi 0, %s119
      %s122 = sphi 0, %s121
      %s136 = sphi 0, %s122
      %s140 = sphi 0, %s140
      %s142 = sphi 0, %s140
      %s143 = sphi 0, %s142
      %s157 = sphi 0, %s143
      %s161 = sphi 0, %s161
      %s163 = sphi 0, %s161
      %s164 = sphi 0, %s163
      %s178 = sphi 0, %s164
      %s182 = sphi 0, %s182
      %s184 = sphi 0, %s182
      %s185 = sphi 0, %s184
      %s199 = sphi 0, %s185
      %s203 = sphi 0, %s203
      %s205 = sphi 0, %s203
      %s206 = sphi 0, %s205
      %s220 = sphi 0, %s206
      %s224 = sphi 0, %s224
      %s226 = sphi 0, %s224
      %s227 = sphi 0, %s226
      %s241 = sphi 0, %s227
      %s245 = sphi 0, %s245
      %s247 = sphi 0, %s245
      %s248 = sphi 0, %s247
      %s262 = sphi 0, %s248
      %s266 = sphi 0, %s266
      %s268 = sphi 0, %s266
      %s269 = sphi 0, %s268
      %s283 = sphi 0, %s269
      %s289 = sphi 0, %s291
      %s292 = sphi 0, %s289
      %s293 = sphi 0, %s292
      %s309 = sphi 0, %s293
    $region4: #{tpu_custom_call.1} parent=1 // loop_header_branch
      %25 = sbr.rel (%p23) target = $region8
    $region5: #{tpu_custom_call.1} parent=1 // loop_body
      %s27 = ssub.s32 %s22, 1
      %s28 = ssub.s32 %s22, 2
      %s29 = sadd.s32 %s22, 1
      %s30 = ssub.s32 %s22, %s29
      %p31 = scmp.eq.s32.totalorder %s30, 0
      %s33 = sadd.s32 %s32, 1
      %s34 = scalar_select %p31, %s32, %s33
      %p37 = pneg %p31
      %p38 = scmp.eq.s32.totalorder %s22, 1
      %p39 = por %p37, %p38
      %p40 = scmp.ne.s32.totalorder %s32, %s35
      %p41 = scmp.eq.s32.totalorder %s22, 0
      %p42 = por %p40, %p41
      %p43 = scmp.ne.s32.totalorder %s32, %s35
      %p44 = scmp.eq.s32.totalorder %s27, 1
      %p45 = por %p43, %p44
      %p46 = scmp.ne.s32.totalorder %s35, %s36
      %p47 = scmp.eq.s32.totalorder %s27, 0
      %p48 = por %p46, %p47
      %p49 = scmp.ne.s32.totalorder %s35, %s36
      %p50 = scmp.eq.s32.totalorder %s28, 1
      %p51 = por %p49, %p50
      %p53 = scmp.ne.s32.totalorder %s36, %s52
      %p54 = scmp.eq.s32.totalorder %s28, 0
      %p55 = por %p53, %p54
      %s57 = sadd.s32 %s56, 1
      %p60 = scmp.eq.s32.totalorder %s22, 1
      %p61 = scmp.ne.s32.totalorder %s56, %s58
      %p62 = scmp.eq.s32.totalorder %s22, 0
      %p63 = por %p61, %p62
      %p64 = scmp.ne.s32.totalorder %s56, %s58
      %p65 = scmp.eq.s32.totalorder %s27, 1
      %p66 = por %p64, %p65
      %p67 = scmp.ne.s32.totalorder %s58, %s59
      %p68 = scmp.eq.s32.totalorder %s27, 0
      %p69 = por %p67, %p68
      %p70 = scmp.ne.s32.totalorder %s58, %s59
      %p71 = scmp.eq.s32.totalorder %s28, 1
      %p72 = por %p70, %p71
      %p74 = scmp.ne.s32.totalorder %s59, %s73
      %p75 = scmp.eq.s32.totalorder %s28, 0
      %p76 = por %p74, %p75
      %s78 = sadd.s32 %s77, 1
      %p81 = scmp.eq.s32.totalorder %s22, 1
      %p82 = scmp.ne.s32.totalorder %s77, %s79
      %p83 = scmp.eq.s32.totalorder %s22, 0
      %p84 = por %p82, %p83
      %p85 = scmp.ne.s32.totalorder %s77, %s79
      %p86 = scmp.eq.s32.totalorder %s27, 1
      %p87 = por %p85, %p86
      %p88 = scmp.ne.s32.totalorder %s79, %s80
      %p89 = scmp.eq.s32.totalorder %s27, 0
      %p90 = por %p88, %p89
      %p91 = scmp.ne.s32.totalorder %s79, %s80
      %p92 = scmp.eq.s32.totalorder %s28, 1
      %p93 = por %p91, %p92
      %p95 = scmp.ne.s32.totalorder %s80, %s94
      %p96 = scmp.eq.s32.totalorder %s28, 0
      %p97 = por %p95, %p96
      %s99 = sadd.s32 %s98, 1
      %p102 = scmp.eq.s32.totalorder %s22, 1
      %p103 = scmp.ne.s32.totalorder %s98, %s100
      %p104 = scmp.eq.s32.totalorder %s22, 0
      %p105 = por %p103, %p104
      %p106 = scmp.ne.s32.totalorder %s98, %s100
      %p107 = scmp.eq.s32.totalorder %s27, 1
      %p108 = por %p106, %p107
      %p109 = scmp.ne.s32.totalorder %s100, %s101
      %p110 = scmp.eq.s32.totalorder %s27, 0
      %p111 = por %p109, %p110
      %p112 = scmp.ne.s32.totalorder %s100, %s101
      %p113 = scmp.eq.s32.totalorder %s28, 1
      %p114 = por %p112, %p113
      %p116 = scmp.ne.s32.totalorder %s101, %s115
      %p117 = scmp.eq.s32.totalorder %s28, 0
      %p118 = por %p116, %p117
      %s120 = sadd.s32 %s119, 1
      %p123 = scmp.eq.s32.totalorder %s22, 1
      %p124 = scmp.ne.s32.totalorder %s119, %s121
      %p125 = scmp.eq.s32.totalorder %s22, 0
      %p126 = por %p124, %p125
      %p127 = scmp.ne.s32.totalorder %s119, %s121
      %p128 = scmp.eq.s32.totalorder %s27, 1
      %p129 = por %p127, %p128
      %p130 = scmp.ne.s32.totalorder %s121, %s122
      %p131 = scmp.eq.s32.totalorder %s27, 0
      %p132 = por %p130, %p131
      %p133 = scmp.ne.s32.totalorder %s121, %s122
      %p134 = scmp.eq.s32.totalorder %s28, 1
      %p135 = por %p133, %p134
      %p137 = scmp.ne.s32.totalorder %s122, %s136
      %p138 = scmp.eq.s32.totalorder %s28, 0
      %p139 = por %p137, %p138
      %s141 = sadd.s32 %s140, 1
      %p144 = scmp.eq.s32.totalorder %s22, 1
      %p145 = scmp.ne.s32.totalorder %s140, %s142
      %p146 = scmp.eq.s32.totalorder %s22, 0
      %p147 = por %p145, %p146
      %p148 = scmp.ne.s32.totalorder %s140, %s142
      %p149 = scmp.eq.s32.totalorder %s27, 1
      %p150 = por %p148, %p149
      %p151 = scmp.ne.s32.totalorder %s142, %s143
      %p152 = scmp.eq.s32.totalorder %s27, 0
      %p153 = por %p151, %p152
      %p154 = scmp.ne.s32.totalorder %s142, %s143
      %p155 = scmp.eq.s32.totalorder %s28, 1
      %p156 = por %p154, %p155
      %p158 = scmp.ne.s32.totalorder %s143, %s157
      %p159 = scmp.eq.s32.totalorder %s28, 0
      %p160 = por %p158, %p159
      %s162 = sadd.s32 %s161, 1
      %p165 = scmp.eq.s32.totalorder %s22, 1
      %p166 = scmp.ne.s32.totalorder %s161, %s163
      %p167 = scmp.eq.s32.totalorder %s22, 0
      %p168 = por %p166, %p167
      %p169 = scmp.ne.s32.totalorder %s161, %s163
      %p170 = scmp.eq.s32.totalorder %s27, 1
      %p171 = por %p169, %p170
      %p172 = scmp.ne.s32.totalorder %s163, %s164
      %p173 = scmp.eq.s32.totalorder %s27, 0
      %p174 = por %p172, %p173
      %p175 = scmp.ne.s32.totalorder %s163, %s164
      %p176 = scmp.eq.s32.totalorder %s28, 1
      %p177 = por %p175, %p176
      %p179 = scmp.ne.s32.totalorder %s164, %s178
      %p180 = scmp.eq.s32.totalorder %s28, 0
      %p181 = por %p179, %p180
      %s183 = sadd.s32 %s182, 1
      %p186 = scmp.eq.s32.totalorder %s22, 1
      %p187 = scmp.ne.s32.totalorder %s182, %s184
      %p188 = scmp.eq.s32.totalorder %s22, 0
      %p189 = por %p187, %p188
      %p190 = scmp.ne.s32.totalorder %s182, %s184
      %p191 = scmp.eq.s32.totalorder %s27, 1
      %p192 = por %p190, %p191
      %p193 = scmp.ne.s32.totalorder %s184, %s185
      %p194 = scmp.eq.s32.totalorder %s27, 0
      %p195 = por %p193, %p194
      %p196 = scmp.ne.s32.totalorder %s184, %s185
      %p197 = scmp.eq.s32.totalorder %s28, 1
      %p198 = por %p196, %p197
      %p200 = scmp.ne.s32.totalorder %s185, %s199
      %p201 = scmp.eq.s32.totalorder %s28, 0
      %p202 = por %p200, %p201
      %s204 = sadd.s32 %s203, 1
      %p207 = scmp.eq.s32.totalorder %s22, 1
      %p208 = scmp.ne.s32.totalorder %s203, %s205
      %p209 = scmp.eq.s32.totalorder %s22, 0
      %p210 = por %p208, %p209
      %p211 = scmp.ne.s32.totalorder %s203, %s205
      %p212 = scmp.eq.s32.totalorder %s27, 1
      %p213 = por %p211, %p212
      %p214 = scmp.ne.s32.totalorder %s205, %s206
      %p215 = scmp.eq.s32.totalorder %s27, 0
      %p216 = por %p214, %p215
      %p217 = scmp.ne.s32.totalorder %s205, %s206
      %p218 = scmp.eq.s32.totalorder %s28, 1
      %p219 = por %p217, %p218
      %p221 = scmp.ne.s32.totalorder %s206, %s220
      %p222 = scmp.eq.s32.totalorder %s28, 0
      %p223 = por %p221, %p222
      %s225 = sadd.s32 %s224, 1
      %p228 = scmp.eq.s32.totalorder %s22, 1
      %p229 = scmp.ne.s32.totalorder %s224, %s226
      %p230 = scmp.eq.s32.totalorder %s22, 0
      %p231 = por %p229, %p230
      %p232 = scmp.ne.s32.totalorder %s224, %s226
      %p233 = scmp.eq.s32.totalorder %s27, 1
      %p234 = por %p232, %p233
      %p235 = scmp.ne.s32.totalorder %s226, %s227
      %p236 = scmp.eq.s32.totalorder %s27, 0
      %p237 = por %p235, %p236
      %p238 = scmp.ne.s32.totalorder %s226, %s227
      %p239 = scmp.eq.s32.totalorder %s28, 1
      %p240 = por %p238, %p239
      %p242 = scmp.ne.s32.totalorder %s227, %s241
      %p243 = scmp.eq.s32.totalorder %s28, 0
      %p244 = por %p242, %p243
      %s246 = sadd.s32 %s245, 1
      %p249 = scmp.eq.s32.totalorder %s22, 1
      %p250 = scmp.ne.s32.totalorder %s245, %s247
      %p251 = scmp.eq.s32.totalorder %s22, 0
      %p252 = por %p250, %p251
      %p253 = scmp.ne.s32.totalorder %s245, %s247
      %p254 = scmp.eq.s32.totalorder %s27, 1
      %p255 = por %p253, %p254
      %p256 = scmp.ne.s32.totalorder %s247, %s248
      %p257 = scmp.eq.s32.totalorder %s27, 0
      %p258 = por %p256, %p257
      %p259 = scmp.ne.s32.totalorder %s247, %s248
      %p260 = scmp.eq.s32.totalorder %s28, 1
      %p261 = por %p259, %p260
      %p263 = scmp.ne.s32.totalorder %s248, %s262
      %p264 = scmp.eq.s32.totalorder %s28, 0
      %p265 = por %p263, %p264
      %s267 = sadd.s32 %s266, 1
      %p270 = scmp.eq.s32.totalorder %s22, 1
      %p271 = scmp.ne.s32.totalorder %s266, %s268
      %p272 = scmp.eq.s32.totalorder %s22, 0
      %p273 = por %p271, %p272
      %p274 = scmp.ne.s32.totalorder %s266, %s268
      %p275 = scmp.eq.s32.totalorder %s27, 1
      %p276 = por %p274, %p275
      %p277 = scmp.ne.s32.totalorder %s268, %s269
      %p278 = scmp.eq.s32.totalorder %s27, 0
      %p279 = por %p277, %p278
      %p280 = scmp.ne.s32.totalorder %s268, %s269
      %p281 = scmp.eq.s32.totalorder %s28, 1
      %p282 = por %p280, %p281
      %p284 = scmp.ne.s32.totalorder %s269, %s283
      %p285 = scmp.eq.s32.totalorder %s28, 0
      %p286 = por %p284, %p285
      %s287 = ssub.s32 %s22, %s29
      %p288 = scmp.eq.s32.totalorder %s287, 0
      %s290 = sadd.s32 %s289, 1
      %s291 = scalar_select %p288, %s289, %s290
      %p294 = pneg %p288
      %p295 = scmp.eq.s32.totalorder %s22, 1
      %p296 = por %p294, %p295
      %p297 = scmp.ne.s32.totalorder %s289, %s292
      %p298 = scmp.eq.s32.totalorder %s22, 0
      %p299 = por %p297, %p298
      %p300 = scmp.ne.s32.totalorder %s289, %s292
      %p301 = scmp.eq.s32.totalorder %s27, 1
      %p302 = por %p300, %p301
      %p303 = scmp.ne.s32.totalorder %s292, %s293
      %p304 = scmp.eq.s32.totalorder %s27, 0
      %p305 = por %p303, %p304
      %p306 = scmp.ne.s32.totalorder %s292, %s293
      %p307 = scmp.eq.s32.totalorder %s28, 1
      %p308 = por %p306, %p307
      %p310 = scmp.ne.s32.totalorder %s293, %s309
      %p311 = scmp.eq.s32.totalorder %s28, 0
      %p312 = por %p310, %p311
      %p313 = scmp.le.s32.totalorder 1, %s22
      %p314 = scmp.lt.s32.totalorder %s22, 3
      %p315 = pnand %p313, %p314
      %p316 = pneg %p315
      // Predicated region
      $region9: #{tpu_custom_call.1} parent=5 // pred_check
        _
      $region10: #{tpu_custom_call.1} parent=5 // pred_check_branch
        %318 = sbr.rel (%p315) target = $region12
      $region11: #{tpu_custom_call.1} parent=5 // pred_region
        %s319 = ssub.s32 %s22, 1
        // Predicated region
        $region13: #{tpu_custom_call.1} parent=11 // pred_check
          %p320 = pneg %p69
        $region14: #{tpu_custom_call.1} parent=11 // pred_check_branch
          %322 = sbr.rel (%p320) target = $region16
        $region15: #{tpu_custom_call.1} parent=11 // pred_region
          _
        $region16: #{tpu_custom_call.1} parent=11 // pred_fallthru
          _
        // Predicated region
        $region17: #{tpu_custom_call.1} parent=11 // pred_check
          %p323 = pneg %p90
        $region18: #{tpu_custom_call.1} parent=11 // pred_check_branch
          %325 = sbr.rel (%p323) target = $region20
        $region19: #{tpu_custom_call.1} parent=11 // pred_region
          %327 = vsyncadd [#allocation4], 0
          %s329 = sshll.u32 %s2, 4
          %s330 = int_to_ptr.hbm [resolvable:$true] %s329
          %s331 = sshll.u32 [#allocation3], 4
          %s332 = int_to_ptr.vmem [resolvable:$true] %s331
          %334 = dma.hbm_to_vmem [thread:$0]  %s330, 128, %s332, [#allocation4]
        $region20: #{tpu_custom_call.1} parent=11 // pred_fallthru
          _
        // Predicated region
        $region21: #{tpu_custom_call.1} parent=11 // pred_check
          %p335 = pneg %p111
        $region22: #{tpu_custom_call.1} parent=11 // pred_check_branch
          %337 = sbr.rel (%p335) target = $region24
        $region23: #{tpu_custom_call.1} parent=11 // pred_region
          _
        $region24: #{tpu_custom_call.1} parent=11 // pred_fallthru
          _
        // Predicated region
        $region25: #{tpu_custom_call.1} parent=11 // pred_check
          %p338 = pneg %p132
        $region26: #{tpu_custom_call.1} parent=11 // pred_check_branch
          %340 = sbr.rel (%p338) target = $region28
        $region27: #{tpu_custom_call.1} parent=11 // pred_region
          _
        $region28: #{tpu_custom_call.1} parent=11 // pred_fallthru
          _
        // Predicated region
        $region29: #{tpu_custom_call.1} parent=11 // pred_check
          %p341 = pneg %p153
        $region30: #{tpu_custom_call.1} parent=11 // pred_check_branch
          %343 = sbr.rel (%p341) target = $region32
        $region31: #{tpu_custom_call.1} parent=11 // pred_region
          _
        $region32: #{tpu_custom_call.1} parent=11 // pred_fallthru
          _
        // Predicated region
        $region33: #{tpu_custom_call.1} parent=11 // pred_check
          %p344 = pneg %p174
        $region34: #{tpu_custom_call.1} parent=11 // pred_check_branch
          %346 = sbr.rel (%p344) target = $region36
        $region35: #{tpu_custom_call.1} parent=11 // pred_region
          _
        $region36: #{tpu_custom_call.1} parent=11 // pred_fallthru
          _
        // Predicated region
        $region37: #{tpu_custom_call.1} parent=11 // pred_check
          %p347 = pneg %p195
        $region38: #{tpu_custom_call.1} parent=11 // pred_check_branch
          %349 = sbr.rel (%p347) target = $region40
        $region39: #{tpu_custom_call.1} parent=11 // pred_region
          _
        $region40: #{tpu_custom_call.1} parent=11 // pred_fallthru
          _
        // Predicated region
        $region41: #{tpu_custom_call.1} parent=11 // pred_check
          %p350 = pneg %p216
        $region42: #{tpu_custom_call.1} parent=11 // pred_check_branch
          %352 = sbr.rel (%p350) target = $region44
        $region43: #{tpu_custom_call.1} parent=11 // pred_region
          _
        $region44: #{tpu_custom_call.1} parent=11 // pred_fallthru
          _
        // Predicated region
        $region45: #{tpu_custom_call.1} parent=11 // pred_check
          %p353 = pneg %p237
        $region46: #{tpu_custom_call.1} parent=11 // pred_check_branch
          %355 = sbr.rel (%p353) target = $region48
        $region47: #{tpu_custom_call.1} parent=11 // pred_region
          _
        $region48: #{tpu_custom_call.1} parent=11 // pred_fallthru
          _
        // Predicated region
        $region49: #{tpu_custom_call.1} parent=11 // pred_check
          %p356 = pneg %p258
        $region50: #{tpu_custom_call.1} parent=11 // pred_check_branch
          %358 = sbr.rel (%p356) target = $region52
        $region51: #{tpu_custom_call.1} parent=11 // pred_region
          _
        $region52: #{tpu_custom_call.1} parent=11 // pred_fallthru
          _
        // Predicated region
        $region53: #{tpu_custom_call.1} parent=11 // pred_check
          %p359 = pneg %p279
        $region54: #{tpu_custom_call.1} parent=11 // pred_check_branch
          %361 = sbr.rel (%p359) target = $region56
        $region55: #{tpu_custom_call.1} parent=11 // pred_region
          _
        $region56: #{tpu_custom_call.1} parent=11 // pred_fallthru
          _
      $region12: #{tpu_custom_call.1} parent=5 // pred_fallthru
        _
      %p362 = scmp.lt.s32.totalorder %s22, 2
      // Predicated region
      $region57: #{tpu_custom_call.1} parent=5 // pred_check
        %p363 = pneg %p362
      $region58: #{tpu_custom_call.1} parent=5 // pred_check_branch
        %365 = sbr.rel (%p363) target = $region60
      $region59: #{tpu_custom_call.1} parent=5 // pred_region
        // Predicated region
        $region61: #{tpu_custom_call.1} parent=59 // pred_check
          %p366 = pneg %p42
        $region62: #{tpu_custom_call.1} parent=59 // pred_check_branch
          %368 = sbr.rel (%p366) target = $region64
        $region63: #{tpu_custom_call.1} parent=59 // pred_region
          %p369 = scmp.lt.s32.totalorder %s22, 1
          %s370 = scalar_select %p369, %s22, 1
          %s371 = smul.addr %s370, 8
          %s372 = scalar_lea.vmem %s0, %s371
        $region64: #{tpu_custom_call.1} parent=59 // pred_fallthru
          _
      $region60: #{tpu_custom_call.1} parent=5 // pred_fallthru
        _
      %p373 = scmp.le.s32.totalorder 1, %s22
      %p374 = scmp.lt.s32.totalorder %s22, 3
      %p375 = pnand %p373, %p374
      %p376 = pneg %p375
      // Predicated region
      $region65: #{tpu_custom_call.1} parent=5 // pred_check
        _
      $region66: #{tpu_custom_call.1} parent=5 // pred_check_branch
        %378 = sbr.rel (%p375) target = $region68
      $region67: #{tpu_custom_call.1} parent=5 // pred_region
        %s379 = ssub.s32 %s22, 1
        // Predicated region
        $region69: #{tpu_custom_call.1} parent=67 // pred_check
          %p380 = pneg %p90
        $region70: #{tpu_custom_call.1} parent=67 // pred_check_branch
          %382 = sbr.rel (%p380) target = $region72
        $region71: #{tpu_custom_call.1} parent=67 // pred_region
          %384 = dma.done [#allocation4], 128
        $region72: #{tpu_custom_call.1} parent=67 // pred_fallthru
          _
        %p385 = scmp.lt.s32.totalorder %s27, 1
        %s386 = scalar_select %p385, %s27, 1
        %s387 = smul.addr %s386, 8
        %s388 = scalar_lea.vmem %s0, %s387
        %p389 = pneg %p48
        %p390 = pneg %p45
        %p391 = pneg %p69
        %p392 = pneg %p66
        %p393 = pneg %p90
        %p394 = pneg %p87
        %p395 = pneg %p111
        %p396 = pneg %p108
        %p397 = pneg %p132
        %p398 = pneg %p129
        %p399 = pneg %p153
        %p400 = pneg %p150
        %p401 = pneg %p174
        %p402 = pneg %p171
        %p403 = pneg %p195
        %p404 = pneg %p192
        %p405 = pneg %p216
        %p406 = pneg %p213
        %p407 = pneg %p237
        %p408 = pneg %p234
        %p409 = pneg %p258
        %p410 = pneg %p255
        %p411 = pneg %p279
        %p412 = pneg %p276
        %p413 = pneg %p305
        %p414 = pneg %p302
        %s415 = sand.u32 %s292, 1
        %s416 = scalar_lea.sflag [#allocation5], %s415
        %s417 = sand.u32 %s292, 1
        %s418 = smul.addr %s417, 8
        %s419 = scalar_lea.vmem [#allocation6], %s418
        %p420 = scmp.lt.s32.totalorder %s27, 1
        %s421 = scalar_select %p420, %s27, 1
        %s422 = smul.addr %s421, 8
        %s423 = scalar_lea.vmem %s0, %s422
        %v425 = vld [vmem:[%s423] sm:$0xff]
        %v426 = vld [vmem:[%s3] sm:$0x1]
        %v427 = vmul.f32 %v425, %v425
        %vm428 = vcmask 261120
        %v429 = vsel %vm428, %v427, 0.0
        %430 = vadd.xlane.f32.xlu0 %v429
        %v431 = vpop.xlane.xlu0 %430
        %v432 = vrcp.pop 32.0
        %v433 = vmul.f32 32.0, %v432
        %v434 = vsub.f32 1.0, %v433
        %v435 = vmul.f32 %v432, %v434
        %v436 = vadd.f32 %v432, %v435
        %vm437 = vweird.f32 %v432
        %v438 = vsel %vm437, %v432, %v436
        %v439 = vmul.f32 %v431, %v438
        %v440 = vadd.f32 %v439, 1e-05
        %v441 = vrsqrt.pop %v440
        %v442 = vmul.f32 %v441, %v440
        %v443 = vmul.f32 %v442, %v441
        %v444 = vmul.f32 0.5, %v443
        %v445 = vsub.f32 1.5, %v444
        %v446 = vmul.f32 %v441, %v445
        %vm447 = vweird.f32 %v440
        %vm448 = vweird.f32 %v441
        %vm449 = vmor %vm447, %vm448
        %v450 = vsel %vm449, %v441, %v446
        %v451 = vmul.f32 %v425, %v450
        %v453 = vperm.slane %v426, 0
        %v455 = vmul.f32 %v451, %v453
        %v456 = vpack.c.bf16 %v455, %v455
        %v457 = vld [vmem:[%s5] sm:$0xf]
        %v458 = vld [vmem:[%s5 + $0x4] sm:$0xf]
        %v459 = vld [vmem:[%s5 + $0x8] sm:$0xf]
        %v460 = vld [vmem:[%s5 + $0xc] sm:$0xf]
        %v465 = vunpack.c.l.b16 %v457
        %v466 = vunpack.c.l.b16 %v458
        %v467 = vunpack.c.l.b16 %v459
        %v468 = vunpack.c.l.b16 %v460
        %v469 = vpack.c.b16 %v466, %v465
        %v470 = vpack.c.b16 %v468, %v467
        %v474 = vsel %vm428, %v456, 0
        %476 = vmatpush.bf16.msra.mxu0 0
        %477 = vmatpush.bf16.msra.mxu0 0
        %478 = vmatpush.bf16.msra.mxu0 0
        %479 = vmatpush.bf16.msra.mxu0 0
        %480 = vmatpush.bf16.msra.mxu0 0
        %481 = vmatpush.bf16.msra.mxu0 0
        %482 = vmatpush.bf16.msra.mxu0 %v470
        %483 = vmatpush.bf16.msra.mxu0 %v469
        %484 = vmatmul.bf16.gmra.mxu0 %v474
        %v485 = vpop.f32.mrf.mxu0
        %v486 = vadd.f32 0.0, %v485
        %v487 = vpop.f32.mrf.mxu0
        %488 = vdwg.mxu0
        %v489 = vld [vmem:[%s6] sm:$0xf]
        %v490 = vld [vmem:[%s6 + $0x4] sm:$0xf]
        %v491 = vld [vmem:[%s6 + $0x8] sm:$0xf]
        %v492 = vld [vmem:[%s6 + $0xc] sm:$0xf]
        %v497 = vunpack.c.l.b16 %v489
        %v498 = vunpack.c.l.b16 %v490
        %v499 = vunpack.c.l.b16 %v491
        %v500 = vunpack.c.l.b16 %v492
        %v501 = vpack.c.b16 %v498, %v497
        %v502 = vpack.c.b16 %v500, %v499
        %505 = vmatpush.bf16.msra.mxu0 0
        %506 = vmatpush.bf16.msra.mxu0 0
        %507 = vmatpush.bf16.msra.mxu0 0
        %508 = vmatpush.bf16.msra.mxu0 0
        %509 = vmatpush.bf16.msra.mxu0 0
        %510 = vmatpush.bf16.msra.mxu0 0
        %511 = vmatpush.bf16.msra.mxu0 %v502
        %512 = vmatpush.bf16.msra.mxu0 %v501
        %513 = vmatmul.bf16.gmra.mxu0 %v474
        %v514 = vpop.f32.mrf.mxu0
        %v515 = vadd.f32 0.0, %v514
        %v516 = vpop.f32.mrf.mxu0
        %517 = vdwg.mxu0
        %v518 = vld [vmem:[%s7] sm:$0xf]
        %v519 = vld [vmem:[%s7 + $0x4] sm:$0xf]
        %v520 = vld [vmem:[%s7 + $0x8] sm:$0xf]
        %v521 = vld [vmem:[%s7 + $0xc] sm:$0xf]
        %v526 = vunpack.c.l.b16 %v518
        %v527 = vunpack.c.l.b16 %v519
        %v528 = vunpack.c.l.b16 %v520
        %v529 = vunpack.c.l.b16 %v521
        %v530 = vpack.c.b16 %v527, %v526
        %v531 = vpack.c.b16 %v529, %v528
        %534 = vmatpush.bf16.msra.mxu0 0
        %535 = vmatpush.bf16.msra.mxu0 0
        %536 = vmatpush.bf16.msra.mxu0 0
        %537 = vmatpush.bf16.msra.mxu0 0
        %538 = vmatpush.bf16.msra.mxu0 0
        %539 = vmatpush.bf16.msra.mxu0 0
        %540 = vmatpush.bf16.msra.mxu0 %v531
        %541 = vmatpush.bf16.msra.mxu0 %v530
        %542 = vmatmul.bf16.gmra.mxu0 %v474
        %v543 = vpop.f32.mrf.mxu0
        %v544 = vadd.f32 0.0, %v543
        %v545 = vpop.f32.mrf.mxu0
        %546 = vdwg.mxu0
        %v547 = vld [vmem:[%s1] sm:$0xff]
        %v548 = vld [vmem:[#allocation3] sm:$0xff]
        %550 = vrot.lane.b32.xlu0 %v515, 124
        %v551 = vpop.permute.xlu0 %550
        %553 = vrot.lane.b32.xlu0 %v515, 4
        %v554 = vpop.permute.xlu0 %553
        %vm556 = vcmask 31744
        %v557 = vsel %vm556, %v551, %v554
        %v558 = vmul.f32 %v515, %v547
        %v559 = vmul.f32 %v557, %v548
        %v560 = vadd.f32 %v558, %v559
        %v561 = vpack.c.bf16 %v560, %v560
        %v562 = vpack.c.bf16 %v544, %v544
        %564 = vrot.lane.b32.xlu0 %v486, 124
        %v565 = vpop.permute.xlu0 %564
        %567 = vrot.lane.b32.xlu0 %v486, 4
        %v568 = vpop.permute.xlu0 %567
        %v570 = vsel %vm556, %v565, %v568
        %v571 = vmul.f32 %v486, %v547
        %v572 = vmul.f32 %v570, %v548
        %v573 = vadd.f32 %v571, %v572
        %574 = vrot.lane.b32.xlu0 %v486, 116
        %v575 = vpop.permute.xlu0 %574
        %v577 = vsel %vm556, %v575, %v565
        %579 = vrot.lane.b32.xlu0 %v547, 8
        %v580 = vpop.permute.xlu0 %579
        %v582 = vmul.f32 %v486, %v580
        %v583 = vmul.f32 %v577, %v548
        %585 = vrot.lane.b32.xlu0 %v583, 8
        %v586 = vpop.permute.xlu0 %585
        %v588 = vadd.f32 %v582, %v586
        %590 = vrot.lane.b32.xlu0 %v588, 120
        %v591 = vpop.permute.xlu0 %590
        %v593 = vpack.c.bf16 %v591, %v573
        %vm594 = vcmask 64512
        %v596 = vsel %vm594, %v593, 0
        %v599 = vsel %vm594, %v561, 0
        %601 = vmatpush.bf16.xpose.msra.mxu0 0
        %602 = vmatpush.bf16.xpose.msra.mxu0 0
        %603 = vmatpush.bf16.xpose.msra.mxu0 0
        %604 = vmatpush.bf16.xpose.msra.mxu0 0
        %605 = vmatpush.bf16.xpose.msra.mxu0 0
        %606 = vmatpush.bf16.xpose.msra.mxu0 0
        %607 = vmatpush.bf16.xpose.msra.mxu0 0
        %608 = vmatpush.bf16.xpose.msra.mxu0 %v599
        %609 = vmatmul.bf16.gmra.mxu0 %v596
        %v610 = vpop.f32.mrf.mxu0
        %v611 = vadd.f32 0.0, %v610
        %v612 = vpop.f32.mrf.mxu0
        %v613 = vadd.f32 0.0, %v612
        %614 = vdwg.mxu0
        %v615 = vsel %vm594, %v611, -inf
        %616 = vmax.xlane.f32.xlu0 %v615
        %v617 = vpop.xlane.xlu0 %616
        %v618 = vsel %vm594, %v613, -inf
        %619 = vmax.xlane.f32.xlu0 %v618
        %v620 = vpop.xlane.xlu0 %619
        %v621 = vsub.f32 %v611, %v617
        %v622 = vsub.f32 %v613, %v620
        %v623 = vmul.f32 %v621, 1.442695
        %v624 = vpow.pop %v623
        %v625 = vmul.f32 %v622, 1.442695
        %v626 = vpow.pop %v625
        %v627 = vsel %vm594, %v624, 0.0
        %628 = vadd.xlane.f32.xlu0 %v627
        %v629 = vpop.xlane.xlu0 %628
        %v630 = vsel %vm594, %v626, 0.0
        %631 = vadd.xlane.f32.xlu0 %v630
        %v632 = vpop.xlane.xlu0 %631
        %v633 = vpack.c.bf16 %v626, %v624
        %v635 = vsel %vm594, %v633, 0
        %vm637 = vcmask 1043456
        %v639 = vsel %vm637, %v562, 0
        %641 = vmatpush.bf16.msra.mxu0 0
        %642 = vmatpush.bf16.msra.mxu0 0
        %643 = vmatpush.bf16.msra.mxu0 0
        %644 = vmatpush.bf16.msra.mxu0 0
        %645 = vmatpush.bf16.msra.mxu0 0
        %646 = vmatpush.bf16.msra.mxu0 0
        %647 = vmatpush.bf16.msra.mxu0 0
        %648 = vmatpush.bf16.msra.mxu0 %v639
        %649 = vmatmul.bf16.gmra.mxu0 %v635
        %v650 = vpop.f32.mrf.mxu0
        %v651 = vadd.f32 0.0, %v650
        %v652 = vpop.f32.mrf.mxu0
        %v653 = vadd.f32 0.0, %v652
        %654 = vdwg.mxu0
        %v655 = vrcp.pop %v629
        %v656 = vrcp.pop %v632
        %v657 = vmul.f32 %v651, %v655
        %v658 = vmul.f32 %v653, %v656
        %v659 = vpack.c.bf16 %v657, %v657
        %vm660 = vcmask 60416
        %661 = vst.msk [vmem:[#allocation2] sm:$0xf] %vm660, %v659
        %v662 = vpack.c.bf16 %v658, %v658
        %664 = vrot.lane.b32.xlu0 %v662, 8
        %v665 = vpop.permute.xlu0 %664
        %vm667 = vcmask 126016
        %668 = vst.msk [vmem:[#allocation2] sm:$0xf] %vm667, %v665
        %669 = vrot.lane.b32.xlu0 %v515, 116
        %v670 = vpop.permute.xlu0 %669
        %v672 = vsel %vm556, %v670, %v551
        %v673 = vmul.f32 %v515, %v580
        %v674 = vmul.f32 %v672, %v548
        %676 = vrot.lane.b32.xlu0 %v674, 8
        %v677 = vpop.permute.xlu0 %676
        %v679 = vadd.f32 %v673, %v677
        %v680 = vpack.c.bf16 %v679, %v679
        %681 = vrot.lane.b32.xlu0 %v486, 108
        %v682 = vpop.permute.xlu0 %681
        %v684 = vsel %vm556, %v682, %v575
        %685 = vrot.lane.b32.xlu0 %v547, 16
        %v686 = vpop.permute.xlu0 %685
        %v688 = vmul.f32 %v486, %v686
        %v689 = vmul.f32 %v684, %v548
        %691 = vrot.lane.b32.xlu0 %v689, 16
        %v692 = vpop.permute.xlu0 %691
        %v694 = vadd.f32 %v688, %v692
        %695 = vrot.lane.b32.xlu0 %v486, 100
        %v696 = vpop.permute.xlu0 %695
        %v698 = vsel %vm556, %v696, %v682
        %699 = vrot.lane.b32.xlu0 %v547, 24
        %v700 = vpop.permute.xlu0 %699
        %v702 = vmul.f32 %v486, %v700
        %v703 = vmul.f32 %v698, %v548
        %705 = vrot.lane.b32.xlu0 %v703, 24
        %v706 = vpop.permute.xlu0 %705
        %v708 = vadd.f32 %v702, %v706
        %710 = vrot.lane.b32.xlu0 %v708, 120
        %v711 = vpop.permute.xlu0 %710
        %v713 = vpack.c.bf16 %v711, %v694
        %715 = vrot.lane.b32.xlu0 %v713, 112
        %v716 = vpop.permute.xlu0 %715
        %718 = vrot.lane.b32.xlu0 %v680, 120
        %v719 = vpop.permute.xlu0 %718
        %v721 = vsel %vm594, %v716, 0
        %v724 = vsel %vm594, %v719, 0
        %726 = vmatpush.bf16.xpose.msra.mxu0 0
        %727 = vmatpush.bf16.xpose.msra.mxu0 0
        %728 = vmatpush.bf16.xpose.msra.mxu0 0
        %729 = vmatpush.bf16.xpose.msra.mxu0 0
        %730 = vmatpush.bf16.xpose.msra.mxu0 0
        %731 = vmatpush.bf16.xpose.msra.mxu0 0
        %732 = vmatpush.bf16.xpose.msra.mxu0 0
        %733 = vmatpush.bf16.xpose.msra.mxu0 %v724
        %734 = vmatmul.bf16.gmra.mxu0 %v721
        %v735 = vpop.f32.mrf.mxu0
        %v736 = vadd.f32 0.0, %v735
        %v737 = vpop.f32.mrf.mxu0
        %v738 = vadd.f32 0.0, %v737
        %739 = vdwg.mxu0
        %v740 = vsel %vm594, %v736, -inf
        %741 = vmax.xlane.f32.xlu0 %v740
        %v742 = vpop.xlane.xlu0 %741
        %v743 = vsel %vm594, %v738, -inf
        %744 = vmax.xlane.f32.xlu0 %v743
        %v745 = vpop.xlane.xlu0 %744
        %v746 = vsub.f32 %v736, %v742
        %v747 = vsub.f32 %v738, %v745
        %v748 = vmul.f32 %v746, 1.442695
        %v749 = vpow.pop %v748
        %v750 = vmul.f32 %v747, 1.442695
        %v751 = vpow.pop %v750
        %v752 = vsel %vm594, %v749, 0.0
        %753 = vadd.xlane.f32.xlu0 %v752
        %v754 = vpop.xlane.xlu0 %753
        %v755 = vsel %vm594, %v751, 0.0
        %756 = vadd.xlane.f32.xlu0 %v755
        %v757 = vpop.xlane.xlu0 %756
        %v758 = vpack.c.bf16 %v751, %v749
        %760 = vrot.lane.b32.xlu0 %v562, 120
        %v761 = vpop.permute.xlu0 %760
        %v763 = vsel %vm594, %v758, 0
        %v766 = vsel %vm637, %v761, 0
        %768 = vmatpush.bf16.msra.mxu0 0
        %769 = vmatpush.bf16.msra.mxu0 0
        %770 = vmatpush.bf16.msra.mxu0 0
        %771 = vmatpush.bf16.msra.mxu0 0
        %772 = vmatpush.bf16.msra.mxu0 0
        %773 = vmatpush.bf16.msra.mxu0 0
        %774 = vmatpush.bf16.msra.mxu0 0
        %775 = vmatpush.bf16.msra.mxu0 %v766
        %776 = vmatmul.bf16.gmra.mxu0 %v763
        %v777 = vpop.f32.mrf.mxu0
        %v778 = vadd.f32 0.0, %v777
        %v779 = vpop.f32.mrf.mxu0
        %v780 = vadd.f32 0.0, %v779
        %781 = vdwg.mxu0
        %v782 = vrcp.pop %v754
        %v783 = vrcp.pop %v757
        %v784 = vmul.f32 %v778, %v782
        %v785 = vmul.f32 %v780, %v783
        %v786 = vpack.c.bf16 %v784, %v784
        %788 = vrot.lane.b32.xlu0 %v786, 16
        %v789 = vpop.permute.xlu0 %788
        %vm791 = vcmask 191616
        %792 = vst.msk [vmem:[#allocation2] sm:$0xf] %vm791, %v789
        %v793 = vpack.c.bf16 %v785, %v785
        %795 = vrot.lane.b32.xlu0 %v793, 24
        %v796 = vpop.permute.xlu0 %795
        %vm798 = vcmask 257216
        %799 = vst.msk [vmem:[#allocation2] sm:$0xf] %vm798, %v796
        %v800 = vld [vmem:[#allocation2] sm:$0xf]
        %v801 = vld [vmem:[%s8] sm:$0xf]
        %v802 = vld [vmem:[%s8 + $0x4] sm:$0xf]
        %v803 = vld [vmem:[%s8 + $0x8] sm:$0xf]
        %v804 = vld [vmem:[%s8 + $0xc] sm:$0xf]
        %v809 = vunpack.c.l.b16 %v801
        %v810 = vunpack.c.l.b16 %v802
        %v811 = vunpack.c.l.b16 %v803
        %v812 = vunpack.c.l.b16 %v804
        %v813 = vpack.c.b16 %v810, %v809
        %v814 = vpack.c.b16 %v812, %v811
        %v818 = vsel %vm428, %v800, 0
        %820 = vmatpush.bf16.msra.mxu0 0
        %821 = vmatpush.bf16.msra.mxu0 0
        %822 = vmatpush.bf16.msra.mxu0 0
        %823 = vmatpush.bf16.msra.mxu0 0
        %824 = vmatpush.bf16.msra.mxu0 0
        %825 = vmatpush.bf16.msra.mxu0 0
        %826 = vmatpush.bf16.msra.mxu0 %v814
        %827 = vmatpush.bf16.msra.mxu0 %v813
        %828 = vmatmul.bf16.gmra.mxu0 %v818
        %v829 = vpop.f32.mrf.mxu0
        %v830 = vadd.f32 0.0, %v829
        %v831 = vpop.f32.mrf.mxu0
        %832 = vdwg.mxu0
        %v833 = vadd.f32 %v425, %v830
        %v834 = vld [vmem:[%s4] sm:$0x1]
        %v835 = vmul.f32 %v833, %v833
        %v836 = vsel %vm428, %v835, 0.0
        %837 = vadd.xlane.f32.xlu0 %v836
        %v838 = vpop.xlane.xlu0 %837
        %v839 = vmul.f32 %v838, %v438
        %v840 = vadd.f32 %v839, 1e-05
        %v841 = vrsqrt.pop %v840
        %v842 = vmul.f32 %v841, %v840
        %v843 = vmul.f32 %v842, %v841
        %v844 = vmul.f32 0.5, %v843
        %v845 = vsub.f32 1.5, %v844
        %v846 = vmul.f32 %v841, %v845
        %vm847 = vweird.f32 %v840
        %vm848 = vweird.f32 %v841
        %vm849 = vmor %vm847, %vm848
        %v850 = vsel %vm849, %v841, %v846
        %v851 = vmul.f32 %v833, %v850
        %v853 = vperm.slane %v834, 0
        %v855 = vmul.f32 %v851, %v853
        %v856 = vpack.c.bf16 %v855, %v855
        %v857 = vld [vmem:[%s9] sm:$0xf]
        %v858 = vld [vmem:[%s9 + $0x4] sm:$0xf]
        %v859 = vld [vmem:[%s9 + $0x8] sm:$0xf]
        %v860 = vld [vmem:[%s9 + $0xc] sm:$0xf]
        %v865 = vunpack.c.l.b16 %v857
        %v866 = vunpack.c.l.b16 %v858
        %v867 = vunpack.c.l.b16 %v859
        %v868 = vunpack.c.l.b16 %v860
        %v869 = vpack.c.b16 %v866, %v865
        %v870 = vpack.c.b16 %v868, %v867
        %v874 = vsel %vm428, %v856, 0
        %876 = vmatpush.bf16.msra.mxu0 0
        %877 = vmatpush.bf16.msra.mxu0 0
        %878 = vmatpush.bf16.msra.mxu0 0
        %879 = vmatpush.bf16.msra.mxu0 0
        %880 = vmatpush.bf16.msra.mxu0 0
        %881 = vmatpush.bf16.msra.mxu0 0
        %882 = vmatpush.bf16.msra.mxu0 %v870
        %883 = vmatpush.bf16.msra.mxu0 %v869
        %884 = vmatmul.bf16.gmra.mxu0 %v874
        %v885 = vpop.f32.mrf.mxu0
        %v886 = vadd.f32 0.0, %v885
        %v887 = vpop.f32.mrf.mxu0
        %888 = vdwg.mxu0
        %v889 = vld [vmem:[%s10] sm:$0xf]
        %v890 = vld [vmem:[%s10 + $0x4] sm:$0xf]
        %v891 = vld [vmem:[%s10 + $0x8] sm:$0xf]
        %v892 = vld [vmem:[%s10 + $0xc] sm:$0xf]
        %v897 = vunpack.c.l.b16 %v889
        %v898 = vunpack.c.l.b16 %v890
        %v899 = vunpack.c.l.b16 %v891
        %v900 = vunpack.c.l.b16 %v892
        %v901 = vpack.c.b16 %v898, %v897
        %v902 = vpack.c.b16 %v900, %v899
        %905 = vmatpush.bf16.msra.mxu0 0
        %906 = vmatpush.bf16.msra.mxu0 0
        %907 = vmatpush.bf16.msra.mxu0 0
        %908 = vmatpush.bf16.msra.mxu0 0
        %909 = vmatpush.bf16.msra.mxu0 0
        %910 = vmatpush.bf16.msra.mxu0 0
        %911 = vmatpush.bf16.msra.mxu0 %v902
        %912 = vmatpush.bf16.msra.mxu0 %v901
        %913 = vmatmul.bf16.gmra.mxu0 %v874
        %v914 = vpop.f32.mrf.mxu0
        %v915 = vadd.f32 0.0, %v914
        %v916 = vpop.f32.mrf.mxu0
        %917 = vdwg.mxu0
        %v918 = vxor.u32 %v886, 2147483648
        %v919 = vmul.f32 %v918, 1.442695
        %v920 = vpow.pop %v919
        %v921 = vadd.f32 %v920, 1.0
        %v922 = vrcp.pop %v921
        %v923 = vmul.f32 %v921, %v922
        %v924 = vsub.f32 1.0, %v923
        %v925 = vmul.f32 %v922, %v924
        %v926 = vadd.f32 %v922, %v925
        %vm927 = vweird.f32 %v921
        %vm928 = vweird.f32 %v922
        %vm929 = vmor %vm927, %vm928
        %v930 = vsel %vm929, %v922, %v926
        %v931 = vand.u32 2147483647, %v921
        %vm932 = vcmp.eq.f32.partialorder %v931, 8.507059e+37
        %v933 = vand.u32 %v921, 2147483648
        %v934 = vor.u32 1.1754944e-38, %v933
        %v935 = vsel %vm932, %v934, %v930
        %v936 = vmul.f32 1.0, %v935
        %v937 = vmul.f32 %v886, %v936
        %v938 = vmul.f32 %v937, %v915
        %v939 = vpack.c.bf16 %v938, %v938
        %v940 = vld [vmem:[%s11] sm:$0xf]
        %v941 = vld [vmem:[%s11 + $0x4] sm:$0xf]
        %v942 = vld [vmem:[%s11 + $0x8] sm:$0xf]
        %v943 = vld [vmem:[%s11 + $0xc] sm:$0xf]
        %v944 = vld [vmem:[%s11 + $0x10] sm:$0xf]
        %v945 = vld [vmem:[%s11 + $0x14] sm:$0xf]
        %v946 = vld [vmem:[%s11 + $0x18] sm:$0xf]
        %v947 = vld [vmem:[%s11 + $0x1c] sm:$0xf]
        %v948 = vld [vmem:[%s11 + $0x20] sm:$0xf]
        %v949 = vld [vmem:[%s11 + $0x24] sm:$0xf]
        %v950 = vld [vmem:[%s11 + $0x28] sm:$0xf]
        %v951 = vld [vmem:[%s11 + $0x2c] sm:$0xf]
        %v964 = vunpack.c.l.b16 %v940
        %v965 = vunpack.c.l.b16 %v941
        %v966 = vunpack.c.l.b16 %v942
        %v967 = vunpack.c.l.b16 %v943
        %v968 = vunpack.c.l.b16 %v944
        %v969 = vunpack.c.l.b16 %v945
        %v970 = vunpack.c.l.b16 %v946
        %v971 = vunpack.c.l.b16 %v947
        %v972 = vunpack.c.l.b16 %v948
        %v973 = vunpack.c.l.b16 %v949
        %v974 = vunpack.c.l.b16 %v950
        %v975 = vunpack.c.l.b16 %v951
        %v976 = vpack.c.b16 %v965, %v964
        %v977 = vpack.c.b16 %v967, %v966
        %v978 = vpack.c.b16 %v969, %v968
        %v979 = vpack.c.b16 %v971, %v970
        %v980 = vpack.c.b16 %v973, %v972
        %v981 = vpack.c.b16 %v975, %v974
        %vm988 = vcmask 785408
        %v990 = vsel %vm988, %v939, 0
        %992 = vmatpush.bf16.msra.mxu0 0
        %993 = vmatpush.bf16.msra.mxu0 0
        %994 = vmatpush.bf16.msra.mxu0 %v981
        %995 = vmatpush.bf16.msra.mxu0 %v980
        %996 = vmatpush.bf16.msra.mxu0 %v979
        %997 = vmatpush.bf16.msra.mxu0 %v978
        %998 = vmatpush.bf16.msra.mxu0 %v977
        %999 = vmatpush.bf16.msra.mxu0 %v976
        %1000 = vmatmul.bf16.gmra.mxu0 %v990
        %v1001 = vpop.f32.mrf.mxu0
        %v1002 = vadd.f32 0.0, %v1001
        %v1003 = vpop.f32.mrf.mxu0
        %1004 = vdwg.mxu0
        %v1005 = vadd.f32 %v833, %v1002
        %1006 = vst.msk [vmem:[%s419] sm:$0xff] %vm428, %v1005
        %s1007 = sand.u32 %s292, 1
        %s1008 = scalar_lea.sflag [#allocation5], %s1007
        %s1009 = sand.u32 %s292, 1
        %s1010 = smul.addr %s1009, 8
        %s1011 = scalar_lea.vmem [#allocation6], %s1010
        // Predicated region
        $region73: #{tpu_custom_call.1} parent=67 // pred_check
          %p1012 = pneg %p302
        $region74: #{tpu_custom_call.1} parent=67 // pred_check_branch
          %1014 = sbr.rel (%p1012) target = $region76
        $region75: #{tpu_custom_call.1} parent=67 // pred_region
          %1016 = vsyncadd %s1008, 0
          %s1017 = smul.addr %s27, 8
          %s1018 = scalar_lea.hbm %s12, %s1017
          %s1020 = sshll.u32 %s1011, 4
          %s1021 = int_to_ptr.vmem [resolvable:$true] %s1020
          %s1022 = sshll.u32 %s1018, 4
          %s1023 = int_to_ptr.hbm [resolvable:$true] %s1022
          %1025 = dma.vmem_to_hbm [thread:$0]  %s1021, 128, %s1023, %s1008
        $region76: #{tpu_custom_call.1} parent=67 // pred_fallthru
          _
      $region68: #{tpu_custom_call.1} parent=5 // pred_fallthru
        _
      %p1026 = scmp.le.s32.totalorder 2, %s22
      // Predicated region
      $region77: #{tpu_custom_call.1} parent=5 // pred_check
        %p1027 = pneg %p1026
      $region78: #{tpu_custom_call.1} parent=5 // pred_check_branch
        %1029 = sbr.rel (%p1027) target = $region80
      $region79: #{tpu_custom_call.1} parent=5 // pred_region
        %s1030 = ssub.s32 %s22, 2
        // Predicated region
        $region81: #{tpu_custom_call.1} parent=79 // pred_check
          %p1031 = pneg %p308
        $region82: #{tpu_custom_call.1} parent=79 // pred_check_branch
          %1033 = sbr.rel (%p1031) target = $region84
        $region83: #{tpu_custom_call.1} parent=79 // pred_region
          %s1034 = sand.u32 %s293, 1
          %s1035 = scalar_lea.sflag [#allocation5], %s1034
          %s1036 = sand.u32 %s293, 1
          %s1037 = smul.addr %s1036, 8
          %s1038 = scalar_lea.vmem [#allocation6], %s1037
          %1040 = dma.done %s1035, 128
        $region84: #{tpu_custom_call.1} parent=79 // pred_fallthru
          _
      $region80: #{tpu_custom_call.1} parent=5 // pred_fallthru
        _
    $region6: #{tpu_custom_call.1} parent=1 // loop_footer
      %s26 = sadd.s32 1, %s22
    $region7: #{tpu_custom_call.1} parent=1 // loop_footer_branch
      %21 = sbr.rel target = $region3
    $region8: #{tpu_custom_call.1} parent=1 // loop_exit
      _
    %1041 = vsyncpa [#allocation4], 1
    %s1042 = scalar_lea.sflag [#allocation4], 1
    %1043 = vsyncpa %s1042, 1
    %1044 = vsyncpa [#allocation5], 1
    %s1045 = scalar_lea.sflag [#allocation5], 1
    %1046 = vsyncpa %s1045, 1

</llo_original>
